<compile_context>
chip_gen: v5e
topology: v5e:2x2
jax: 0.10.0
libtpu: 0.0.40
codegen_flags: <defaults>
</compile_context>

<pallas_src>
import jax
import jax.numpy as jnp
from jax import lax
from jax.experimental import pallas as pl
from jax.experimental.pallas import tpu as pltpu

HIDDEN_SIZE = 32
INPUT_SIZE = 4
NUM_LAYERS = 1          # kernel implements the single-layer case
NUM_CLASSES = 8
BATCH = 2
SEQ = 8

# ---- Fused parameter slab layout (rows x 128 lanes, f32). -------------------
IN_PAD = 8                       # input size padded up to one sublane tile
ROW_WIH = 0                      # rows  0: 8  -> W_ih^T (I rows valid, rest 0)
ROW_WHH = ROW_WIH + IN_PAD       # rows  8:40  -> W_hh^T
ROW_B = ROW_WHH + HIDDEN_SIZE    # row  40     -> b_ih + b_hh (gate-prescaled)
ROW_FCW = ROW_B + 8              # rows 48:80  -> fc_w^T (lanes 0:C valid)
ROW_FCB = ROW_FCW + HIDDEN_SIZE  # row  80     -> fc_b   (lanes 0:C valid)
PARAM_ROWS = ROW_FCB + 8         # 88 rows total


def lstm_fc_kernel(x_ref, p_ref, out_ref):
    """x_ref: (T*B, IN_PAD) time-major, lane-padded input.
    p_ref: (PARAM_ROWS, 4H) fused parameter slab (gate-prescaled, see pack).
    out_ref: (B, C).  Gate order is PyTorch's [i, f, g, o]."""
    TB = x_ref.shape[0]
    B, C = out_ref.shape
    T = TB // B
    H = HIDDEN_SIZE

    # ---- Static slices of the single fused parameter slab (free). ----
    wih = p_ref[ROW_WIH:ROW_WIH + IN_PAD, :]                    # (8, 4H)
    whh_bf16 = p_ref[ROW_WHH:ROW_WHH + H, :].astype(jnp.bfloat16)  # (H, 4H)
    b = p_ref[ROW_B:ROW_B + 1, :]                               # (1, 4H)
    fcw = p_ref[ROW_FCW:ROW_FCW + H, :]                         # (H, 128)
    fcb = p_ref[ROW_FCB:ROW_FCB + 1, :]                         # (1, 128)

    # ---- Input projection for ALL timesteps in one f32 MXU pass (+ bias). ----
    gates_x = (jnp.dot(x_ref[...], wih,
                       preferred_element_type=jnp.float32) + b)  # (T*B, 4H)

    # ---- t = 0 peeled: h = c = 0, no recurrent matmul, no forget gate. ----
    tg = jnp.tanh(gates_x[0:B, :])            # one EUP push for all 4 gates
    i_g = 0.5 * tg[:, 0 * H:1 * H] + 0.5      # sigmoid(z) = 0.5*tanh(z/2)+0.5
    g_g = tg[:, 2 * H:3 * H]
    o_g = 0.5 * tg[:, 3 * H:4 * H] + 0.5
    c = i_g * g_g
    h = o_g * jnp.tanh(c)

    # ---- Remaining steps, fully unrolled (T is a compile-time constant). ----
    for t in range(1, T):
        gates = gates_x[t * B:(t + 1) * B, :] + jnp.dot(
            h.astype(jnp.bfloat16), whh_bf16,
            preferred_element_type=jnp.float32)                  # (B, 4H)
        tg = jnp.tanh(gates)                  # single EUP push for all 4 gates
        i_g = 0.5 * tg[:, 0 * H:1 * H] + 0.5
        f_g = 0.5 * tg[:, 1 * H:2 * H] + 0.5
        g_g = tg[:, 2 * H:3 * H]
        o_g = 0.5 * tg[:, 3 * H:4 * H] + 0.5
        c = f_g * c + i_g * g_g
        h = o_g * jnp.tanh(c)

    # ---- Final Linear on the last timestep's hidden state (f32). ----
    out_all = jnp.dot(h, fcw, preferred_element_type=jnp.float32) + fcb  # (B,128)
    out_ref[...] = out_all[:, 0:C]


def pack_lstm_params(w_ih, w_hh, b_ih, b_hh, fc_w, fc_b):
    """One-time parameter packing into a single (PARAM_ROWS, 4H) f32 slab.
    The i/f/o gate columns are pre-scaled by 0.5 so the kernel can use the
    single-tanh sigmoid trick.  Kept OUT of the per-call path."""
    H = HIDDEN_SIZE
    gate_scale = jnp.concatenate([
        jnp.full((2 * H,), 0.5, jnp.float32),   # i, f
        jnp.ones((H,), jnp.float32),            # g (tanh gate, unscaled)
        jnp.full((H,), 0.5, jnp.float32),       # o
    ])                                          # (4H,)

    wih_t = jnp.transpose(w_ih).astype(jnp.float32) * gate_scale[None, :]  # (I,4H)
    whh_t = jnp.transpose(w_hh).astype(jnp.float32) * gate_scale[None, :]  # (H,4H)
    b = (b_ih + b_hh).astype(jnp.float32) * gate_scale                      # (4H,)
    fcw_t = jnp.transpose(fc_w).astype(jnp.float32)                         # (H,C)
    fcb = fc_b.astype(jnp.float32)                                          # (C,)

    slab = jnp.zeros((PARAM_ROWS, 4 * H), jnp.float32)
    slab = slab.at[ROW_WIH:ROW_WIH + INPUT_SIZE, :].set(wih_t)
    slab = slab.at[ROW_WHH:ROW_WHH + H, :].set(whh_t)
    slab = slab.at[ROW_B, :].set(b)
    slab = slab.at[ROW_FCW:ROW_FCW + H, 0:NUM_CLASSES].set(fcw_t)
    slab = slab.at[ROW_FCB, 0:NUM_CLASSES].set(fcb)
    return slab


@jax.jit
def lstm_forward(x, params):
    """x: (B, T, I) batch-first float32 (PyTorch convention). Returns (B, C).
    The flatten to time-major (and the lane pad to 8) happens here, OUTSIDE
    the kernel, so the kernel never reshapes across the (8,128) tile layout.
    Raising B (multiples of 8) scales throughput ~linearly with no kernel
    change; B=2 here matches the module's example usage."""
    B, T, I = x.shape
    x_tm = jnp.transpose(x.astype(jnp.float32), (1, 0, 2)).reshape(T * B, I)
    x_tm = jnp.pad(x_tm, ((0, 0), (0, IN_PAD - I)))      # lane-pad I -> 8
    vmem = pl.BlockSpec(memory_space=pltpu.MemorySpace.VMEM)
    return pl.pallas_call(
        lstm_fc_kernel,
        out_shape=jax.ShapeDtypeStruct((B, NUM_CLASSES), jnp.float32),
        in_specs=[vmem, vmem],
        out_specs=vmem,
    )(x_tm, params)


def lstm_forward_ref(x, w_ih, w_hh, b_ih, b_hh, fc_w, fc_b):
    """Pure-JAX f32 reference matching PyTorch nn.LSTM + Linear semantics."""
    B, T, _ = x.shape
    H = HIDDEN_SIZE

    def step(carry, x_t):
        h, c = carry
        gates = x_t @ w_ih.T + b_ih + h @ w_hh.T + b_hh
        i_g = jax.nn.sigmoid(gates[:, 0 * H:1 * H])
        f_g = jax.nn.sigmoid(gates[:, 1 * H:2 * H])
        g_g = jnp.tanh(gates[:, 2 * H:3 * H])
        o_g = jax.nn.sigmoid(gates[:, 3 * H:4 * H])
        c_new = f_g * c + i_g * g_g
        h_new = o_g * jnp.tanh(c_new)
        return (h_new, c_new), None

    h0 = jnp.zeros((B, H), jnp.float32)
    c0 = jnp.zeros((B, H), jnp.float32)
    (h_last, _), _ = lax.scan(step, (h0, c0), jnp.transpose(x, (1, 0, 2)))
    return h_last @ fc_w.T + fc_b


if __name__ == "__main__":
    key = jax.random.PRNGKey(0)
    keys = jax.random.split(key, 8)

    # PyTorch default init scale: uniform(-1/sqrt(hidden), 1/sqrt(hidden)).
    k = 1.0 / jnp.sqrt(jnp.float32(HIDDEN_SIZE))
    w_ih = jax.random.uniform(keys[0], (4 * HIDDEN_SIZE, INPUT_SIZE),
                              jnp.float32, -k, k)
    w_hh = jax.random.uniform(keys[1], (4 * HIDDEN_SIZE, HIDDEN_SIZE),
                              jnp.float32, -k, k)
    b_ih = jax.random.uniform(keys[2], (4 * HIDDEN_SIZE,), jnp.float32, -k, k)
    b_hh = jax.random.uniform(keys[3], (4 * HIDDEN_SIZE,), jnp.float32, -k, k)
    fc_w = jax.random.uniform(keys[4], (NUM_CLASSES, HIDDEN_SIZE),
                              jnp.float32, -k, k)
    fc_b = jax.random.uniform(keys[5], (NUM_CLASSES,), jnp.float32, -k, k)

    x = jax.random.normal(keys[6], (BATCH, SEQ, INPUT_SIZE), jnp.float32)

    # One-time packing (outside the per-call path).
    params = jax.block_until_ready(
        pack_lstm_params(w_ih, w_hh, b_ih, b_hh, fc_w, fc_b))

    out = jax.block_until_ready(lstm_forward(x, params))

    ref = lstm_forward_ref(x, w_ih, w_hh, b_ih, b_hh, fc_w, fc_b)
    assert out.shape == (BATCH, NUM_CLASSES), out.shape
    # Tolerance relaxed (review): the recurrent h @ W_hh matmul deliberately
    # runs in bf16 (f32 accumulation); everything else is f32.
    assert jnp.allclose(out, ref, atol=2e-2, rtol=2e-2), (out, ref)

    print("KERNEL_OK")
</pallas_src>

<mosaic_0001>
module attributes {stable_mosaic.version = 11 : i64} {
  func.func @lstm_fc_kernel(%arg0: memref<16x8xf32, #tpu.memory_space<vmem>>, %arg1: memref<88x128xf32, #tpu.memory_space<vmem>>, %arg2: memref<2x8xf32, #tpu.memory_space<vmem>>) attributes {dimension_semantics = [], scalar_prefetch = 0 : i64, scratch_operands = 0 : i64, tpu.core_type = #tpu.core_type<tc>} {
    %c0 = arith.constant 0 : index
    %c0_0 = arith.constant 0 : index
    %0 = vector.load %arg1[%c0, %c0_0] : memref<88x128xf32, #tpu.memory_space<vmem>>, vector<8x128xf32>
    %c8 = arith.constant 8 : index
    %c0_1 = arith.constant 0 : index
    %1 = vector.load %arg1[%c8, %c0_1] : memref<88x128xf32, #tpu.memory_space<vmem>>, vector<32x128xf32>
    %2 = arith.truncf %1 : vector<32x128xf32> to vector<32x128xbf16>
    %c40 = arith.constant 40 : index
    %c0_2 = arith.constant 0 : index
    %3 = vector.load %arg1[%c40, %c0_2] : memref<88x128xf32, #tpu.memory_space<vmem>>, vector<1x128xf32>
    %c48 = arith.constant 48 : index
    %c0_3 = arith.constant 0 : index
    %4 = vector.load %arg1[%c48, %c0_3] : memref<88x128xf32, #tpu.memory_space<vmem>>, vector<32x128xf32>
    %c80 = arith.constant 80 : index
    %c0_4 = arith.constant 0 : index
    %5 = vector.load %arg1[%c80, %c0_4] : memref<88x128xf32, #tpu.memory_space<vmem>>, vector<1x128xf32>
    %c0_5 = arith.constant 0 : index
    %c0_6 = arith.constant 0 : index
    %6 = vector.load %arg0[%c0_5, %c0_6] : memref<16x8xf32, #tpu.memory_space<vmem>>, vector<16x8xf32>
    %cst = arith.constant dense<0.000000e+00> : vector<16x128xf32>
    %7 = tpu.matmul %6, %0, %cst {dimension_numbers = #tpu.dot_dimension_numbers<[1], [0], [0], [1], [0, 0, 1, 1], [], []>} : vector<16x8xf32>, vector<8x128xf32>, vector<16x128xf32> -> vector<16x128xf32>
    %8 = vector.broadcast %3 : vector<1x128xf32> to vector<16x128xf32>
    %9 = arith.addf %7, %8 : vector<16x128xf32>
    %10 = vector.extract_strided_slice %9 {offsets = [0, 0], sizes = [2, 128], strides = [1, 1]} : vector<16x128xf32> to vector<2x128xf32>
    %11 = math.tanh %10 : vector<2x128xf32>
    %12 = vector.extract_strided_slice %11 {offsets = [0, 0], sizes = [2, 32], strides = [1, 1]} : vector<2x128xf32> to vector<2x32xf32>
    %cst_7 = arith.constant 5.000000e-01 : f32
    %13 = vector.broadcast %cst_7 : f32 to vector<2x32xf32>
    %14 = arith.mulf %13, %12 : vector<2x32xf32>
    %cst_8 = arith.constant 5.000000e-01 : f32
    %15 = vector.broadcast %cst_8 : f32 to vector<2x32xf32>
    %16 = arith.addf %14, %15 : vector<2x32xf32>
    %17 = vector.extract_strided_slice %11 {offsets = [0, 64], sizes = [2, 32], strides = [1, 1]} : vector<2x128xf32> to vector<2x32xf32>
    %18 = vector.extract_strided_slice %11 {offsets = [0, 96], sizes = [2, 32], strides = [1, 1]} : vector<2x128xf32> to vector<2x32xf32>
    %cst_9 = arith.constant 5.000000e-01 : f32
    %19 = vector.broadcast %cst_9 : f32 to vector<2x32xf32>
    %20 = arith.mulf %19, %18 : vector<2x32xf32>
    %cst_10 = arith.constant 5.000000e-01 : f32
    %21 = vector.broadcast %cst_10 : f32 to vector<2x32xf32>
    %22 = arith.addf %20, %21 : vector<2x32xf32>
    %23 = arith.mulf %16, %17 : vector<2x32xf32>
    %24 = math.tanh %23 : vector<2x32xf32>
    %25 = arith.mulf %22, %24 : vector<2x32xf32>
    %26 = vector.extract_strided_slice %9 {offsets = [2, 0], sizes = [2, 128], strides = [1, 1]} : vector<16x128xf32> to vector<2x128xf32>
    %27 = arith.truncf %25 : vector<2x32xf32> to vector<2x32xbf16>
    %cst_11 = arith.constant dense<0.000000e+00> : vector<2x128xf32>
    %28 = tpu.matmul %27, %2, %cst_11 {dimension_numbers = #tpu.dot_dimension_numbers<[1], [0], [0], [1], [0, 0, 1, 1], [], []>} : vector<2x32xbf16>, vector<32x128xbf16>, vector<2x128xf32> -> vector<2x128xf32>
    %29 = arith.addf %26, %28 : vector<2x128xf32>
    %30 = math.tanh %29 : vector<2x128xf32>
    %31 = vector.extract_strided_slice %30 {offsets = [0, 0], sizes = [2, 32], strides = [1, 1]} : vector<2x128xf32> to vector<2x32xf32>
    %cst_12 = arith.constant 5.000000e-01 : f32
    %32 = vector.broadcast %cst_12 : f32 to vector<2x32xf32>
    %33 = arith.mulf %32, %31 : vector<2x32xf32>
    %cst_13 = arith.constant 5.000000e-01 : f32
    %34 = vector.broadcast %cst_13 : f32 to vector<2x32xf32>
    %35 = arith.addf %33, %34 : vector<2x32xf32>
    %36 = vector.extract_strided_slice %30 {offsets = [0, 32], sizes = [2, 32], strides = [1, 1]} : vector<2x128xf32> to vector<2x32xf32>
    %cst_14 = arith.constant 5.000000e-01 : f32
    %37 = vector.broadcast %cst_14 : f32 to vector<2x32xf32>
    %38 = arith.mulf %37, %36 : vector<2x32xf32>
    %cst_15 = arith.constant 5.000000e-01 : f32
    %39 = vector.broadcast %cst_15 : f32 to vector<2x32xf32>
    %40 = arith.addf %38, %39 : vector<2x32xf32>
    %41 = vector.extract_strided_slice %30 {offsets = [0, 64], sizes = [2, 32], strides = [1, 1]} : vector<2x128xf32> to vector<2x32xf32>
    %42 = vector.extract_strided_slice %30 {offsets = [0, 96], sizes = [2, 32], strides = [1, 1]} : vector<2x128xf32> to vector<2x32xf32>
    %cst_16 = arith.constant 5.000000e-01 : f32
    %43 = vector.broadcast %cst_16 : f32 to vector<2x32xf32>
    %44 = arith.mulf %43, %42 : vector<2x32xf32>
    %cst_17 = arith.constant 5.000000e-01 : f32
    %45 = vector.broadcast %cst_17 : f32 to vector<2x32xf32>
    %46 = arith.addf %44, %45 : vector<2x32xf32>
    %47 = arith.mulf %40, %23 : vector<2x32xf32>
    %48 = arith.mulf %35, %41 : vector<2x32xf32>
    %49 = arith.addf %47, %48 : vector<2x32xf32>
    %50 = math.tanh %49 : vector<2x32xf32>
    %51 = arith.mulf %46, %50 : vector<2x32xf32>
    %52 = vector.extract_strided_slice %9 {offsets = [4, 0], sizes = [2, 128], strides = [1, 1]} : vector<16x128xf32> to vector<2x128xf32>
    %53 = arith.truncf %51 : vector<2x32xf32> to vector<2x32xbf16>
    %cst_18 = arith.constant dense<0.000000e+00> : vector<2x128xf32>
    %54 = tpu.matmul %53, %2, %cst_18 {dimension_numbers = #tpu.dot_dimension_numbers<[1], [0], [0], [1], [0, 0, 1, 1], [], []>} : vector<2x32xbf16>, vector<32x128xbf16>, vector<2x128xf32> -> vector<2x128xf32>
    %55 = arith.addf %52, %54 : vector<2x128xf32>
    %56 = math.tanh %55 : vector<2x128xf32>
    %57 = vector.extract_strided_slice %56 {offsets = [0, 0], sizes = [2, 32], strides = [1, 1]} : vector<2x128xf32> to vector<2x32xf32>
    %cst_19 = arith.constant 5.000000e-01 : f32
    %58 = vector.broadcast %cst_19 : f32 to vector<2x32xf32>
    %59 = arith.mulf %58, %57 : vector<2x32xf32>
    %cst_20 = arith.constant 5.000000e-01 : f32
    %60 = vector.broadcast %cst_20 : f32 to vector<2x32xf32>
    %61 = arith.addf %59, %60 : vector<2x32xf32>
    %62 = vector.extract_strided_slice %56 {offsets = [0, 32], sizes = [2, 32], strides = [1, 1]} : vector<2x128xf32> to vector<2x32xf32>
    %cst_21 = arith.constant 5.000000e-01 : f32
    %63 = vector.broadcast %cst_21 : f32 to vector<2x32xf32>
    %64 = arith.mulf %63, %62 : vector<2x32xf32>
    %cst_22 = arith.constant 5.000000e-01 : f32
    %65 = vector.broadcast %cst_22 : f32 to vector<2x32xf32>
    %66 = arith.addf %64, %65 : vector<2x32xf32>
    %67 = vector.extract_strided_slice %56 {offsets = [0, 64], sizes = [2, 32], strides = [1, 1]} : vector<2x128xf32> to vector<2x32xf32>
    %68 = vector.extract_strided_slice %56 {offsets = [0, 96], sizes = [2, 32], strides = [1, 1]} : vector<2x128xf32> to vector<2x32xf32>
    %cst_23 = arith.constant 5.000000e-01 : f32
    %69 = vector.broadcast %cst_23 : f32 to vector<2x32xf32>
    %70 = arith.mulf %69, %68 : vector<2x32xf32>
    %cst_24 = arith.constant 5.000000e-01 : f32
    %71 = vector.broadcast %cst_24 : f32 to vector<2x32xf32>
    %72 = arith.addf %70, %71 : vector<2x32xf32>
    %73 = arith.mulf %66, %49 : vector<2x32xf32>
    %74 = arith.mulf %61, %67 : vector<2x32xf32>
    %75 = arith.addf %73, %74 : vector<2x32xf32>
    %76 = math.tanh %75 : vector<2x32xf32>
    %77 = arith.mulf %72, %76 : vector<2x32xf32>
    %78 = vector.extract_strided_slice %9 {offsets = [6, 0], sizes = [2, 128], strides = [1, 1]} : vector<16x128xf32> to vector<2x128xf32>
    %79 = arith.truncf %77 : vector<2x32xf32> to vector<2x32xbf16>
    %cst_25 = arith.constant dense<0.000000e+00> : vector<2x128xf32>
    %80 = tpu.matmul %79, %2, %cst_25 {dimension_numbers = #tpu.dot_dimension_numbers<[1], [0], [0], [1], [0, 0, 1, 1], [], []>} : vector<2x32xbf16>, vector<32x128xbf16>, vector<2x128xf32> -> vector<2x128xf32>
    %81 = arith.addf %78, %80 : vector<2x128xf32>
    %82 = math.tanh %81 : vector<2x128xf32>
    %83 = vector.extract_strided_slice %82 {offsets = [0, 0], sizes = [2, 32], strides = [1, 1]} : vector<2x128xf32> to vector<2x32xf32>
    %cst_26 = arith.constant 5.000000e-01 : f32
    %84 = vector.broadcast %cst_26 : f32 to vector<2x32xf32>
    %85 = arith.mulf %84, %83 : vector<2x32xf32>
    %cst_27 = arith.constant 5.000000e-01 : f32
    %86 = vector.broadcast %cst_27 : f32 to vector<2x32xf32>
    %87 = arith.addf %85, %86 : vector<2x32xf32>
    %88 = vector.extract_strided_slice %82 {offsets = [0, 32], sizes = [2, 32], strides = [1, 1]} : vector<2x128xf32> to vector<2x32xf32>
    %cst_28 = arith.constant 5.000000e-01 : f32
    %89 = vector.broadcast %cst_28 : f32 to vector<2x32xf32>
    %90 = arith.mulf %89, %88 : vector<2x32xf32>
    %cst_29 = arith.constant 5.000000e-01 : f32
    %91 = vector.broadcast %cst_29 : f32 to vector<2x32xf32>
    %92 = arith.addf %90, %91 : vector<2x32xf32>
    %93 = vector.extract_strided_slice %82 {offsets = [0, 64], sizes = [2, 32], strides = [1, 1]} : vector<2x128xf32> to vector<2x32xf32>
    %94 = vector.extract_strided_slice %82 {offsets = [0, 96], sizes = [2, 32], strides = [1, 1]} : vector<2x128xf32> to vector<2x32xf32>
    %cst_30 = arith.constant 5.000000e-01 : f32
    %95 = vector.broadcast %cst_30 : f32 to vector<2x32xf32>
    %96 = arith.mulf %95, %94 : vector<2x32xf32>
    %cst_31 = arith.constant 5.000000e-01 : f32
    %97 = vector.broadcast %cst_31 : f32 to vector<2x32xf32>
    %98 = arith.addf %96, %97 : vector<2x32xf32>
    %99 = arith.mulf %92, %75 : vector<2x32xf32>
    %100 = arith.mulf %87, %93 : vector<2x32xf32>
    %101 = arith.addf %99, %100 : vector<2x32xf32>
    %102 = math.tanh %101 : vector<2x32xf32>
    %103 = arith.mulf %98, %102 : vector<2x32xf32>
    %104 = vector.extract_strided_slice %9 {offsets = [8, 0], sizes = [2, 128], strides = [1, 1]} : vector<16x128xf32> to vector<2x128xf32>
    %105 = arith.truncf %103 : vector<2x32xf32> to vector<2x32xbf16>
    %cst_32 = arith.constant dense<0.000000e+00> : vector<2x128xf32>
    %106 = tpu.matmul %105, %2, %cst_32 {dimension_numbers = #tpu.dot_dimension_numbers<[1], [0], [0], [1], [0, 0, 1, 1], [], []>} : vector<2x32xbf16>, vector<32x128xbf16>, vector<2x128xf32> -> vector<2x128xf32>
    %107 = arith.addf %104, %106 : vector<2x128xf32>
    %108 = math.tanh %107 : vector<2x128xf32>
    %109 = vector.extract_strided_slice %108 {offsets = [0, 0], sizes = [2, 32], strides = [1, 1]} : vector<2x128xf32> to vector<2x32xf32>
    %cst_33 = arith.constant 5.000000e-01 : f32
    %110 = vector.broadcast %cst_33 : f32 to vector<2x32xf32>
    %111 = arith.mulf %110, %109 : vector<2x32xf32>
    %cst_34 = arith.constant 5.000000e-01 : f32
    %112 = vector.broadcast %cst_34 : f32 to vector<2x32xf32>
    %113 = arith.addf %111, %112 : vector<2x32xf32>
    %114 = vector.extract_strided_slice %108 {offsets = [0, 32], sizes = [2, 32], strides = [1, 1]} : vector<2x128xf32> to vector<2x32xf32>
    %cst_35 = arith.constant 5.000000e-01 : f32
    %115 = vector.broadcast %cst_35 : f32 to vector<2x32xf32>
    %116 = arith.mulf %115, %114 : vector<2x32xf32>
    %cst_36 = arith.constant 5.000000e-01 : f32
    %117 = vector.broadcast %cst_36 : f32 to vector<2x32xf32>
    %118 = arith.addf %116, %117 : vector<2x32xf32>
    %119 = vector.extract_strided_slice %108 {offsets = [0, 64], sizes = [2, 32], strides = [1, 1]} : vector<2x128xf32> to vector<2x32xf32>
    %120 = vector.extract_strided_slice %108 {offsets = [0, 96], sizes = [2, 32], strides = [1, 1]} : vector<2x128xf32> to vector<2x32xf32>
    %cst_37 = arith.constant 5.000000e-01 : f32
    %121 = vector.broadcast %cst_37 : f32 to vector<2x32xf32>
    %122 = arith.mulf %121, %120 : vector<2x32xf32>
    %cst_38 = arith.constant 5.000000e-01 : f32
    %123 = vector.broadcast %cst_38 : f32 to vector<2x32xf32>
    %124 = arith.addf %122, %123 : vector<2x32xf32>
    %125 = arith.mulf %118, %101 : vector<2x32xf32>
    %126 = arith.mulf %113, %119 : vector<2x32xf32>
    %127 = arith.addf %125, %126 : vector<2x32xf32>
    %128 = math.tanh %127 : vector<2x32xf32>
    %129 = arith.mulf %124, %128 : vector<2x32xf32>
    %130 = vector.extract_strided_slice %9 {offsets = [10, 0], sizes = [2, 128], strides = [1, 1]} : vector<16x128xf32> to vector<2x128xf32>
    %131 = arith.truncf %129 : vector<2x32xf32> to vector<2x32xbf16>
    %cst_39 = arith.constant dense<0.000000e+00> : vector<2x128xf32>
    %132 = tpu.matmul %131, %2, %cst_39 {dimension_numbers = #tpu.dot_dimension_numbers<[1], [0], [0], [1], [0, 0, 1, 1], [], []>} : vector<2x32xbf16>, vector<32x128xbf16>, vector<2x128xf32> -> vector<2x128xf32>
    %133 = arith.addf %130, %132 : vector<2x128xf32>
    %134 = math.tanh %133 : vector<2x128xf32>
    %135 = vector.extract_strided_slice %134 {offsets = [0, 0], sizes = [2, 32], strides = [1, 1]} : vector<2x128xf32> to vector<2x32xf32>
    %cst_40 = arith.constant 5.000000e-01 : f32
    %136 = vector.broadcast %cst_40 : f32 to vector<2x32xf32>
    %137 = arith.mulf %136, %135 : vector<2x32xf32>
    %cst_41 = arith.constant 5.000000e-01 : f32
    %138 = vector.broadcast %cst_41 : f32 to vector<2x32xf32>
    %139 = arith.addf %137, %138 : vector<2x32xf32>
    %140 = vector.extract_strided_slice %134 {offsets = [0, 32], sizes = [2, 32], strides = [1, 1]} : vector<2x128xf32> to vector<2x32xf32>
    %cst_42 = arith.constant 5.000000e-01 : f32
    %141 = vector.broadcast %cst_42 : f32 to vector<2x32xf32>
    %142 = arith.mulf %141, %140 : vector<2x32xf32>
    %cst_43 = arith.constant 5.000000e-01 : f32
    %143 = vector.broadcast %cst_43 : f32 to vector<2x32xf32>
    %144 = arith.addf %142, %143 : vector<2x32xf32>
    %145 = vector.extract_strided_slice %134 {offsets = [0, 64], sizes = [2, 32], strides = [1, 1]} : vector<2x128xf32> to vector<2x32xf32>
    %146 = vector.extract_strided_slice %134 {offsets = [0, 96], sizes = [2, 32], strides = [1, 1]} : vector<2x128xf32> to vector<2x32xf32>
    %cst_44 = arith.constant 5.000000e-01 : f32
    %147 = vector.broadcast %cst_44 : f32 to vector<2x32xf32>
    %148 = arith.mulf %147, %146 : vector<2x32xf32>
    %cst_45 = arith.constant 5.000000e-01 : f32
    %149 = vector.broadcast %cst_45 : f32 to vector<2x32xf32>
    %150 = arith.addf %148, %149 : vector<2x32xf32>
    %151 = arith.mulf %144, %127 : vector<2x32xf32>
    %152 = arith.mulf %139, %145 : vector<2x32xf32>
    %153 = arith.addf %151, %152 : vector<2x32xf32>
    %154 = math.tanh %153 : vector<2x32xf32>
    %155 = arith.mulf %150, %154 : vector<2x32xf32>
    %156 = vector.extract_strided_slice %9 {offsets = [12, 0], sizes = [2, 128], strides = [1, 1]} : vector<16x128xf32> to vector<2x128xf32>
    %157 = arith.truncf %155 : vector<2x32xf32> to vector<2x32xbf16>
    %cst_46 = arith.constant dense<0.000000e+00> : vector<2x128xf32>
    %158 = tpu.matmul %157, %2, %cst_46 {dimension_numbers = #tpu.dot_dimension_numbers<[1], [0], [0], [1], [0, 0, 1, 1], [], []>} : vector<2x32xbf16>, vector<32x128xbf16>, vector<2x128xf32> -> vector<2x128xf32>
    %159 = arith.addf %156, %158 : vector<2x128xf32>
    %160 = math.tanh %159 : vector<2x128xf32>
    %161 = vector.extract_strided_slice %160 {offsets = [0, 0], sizes = [2, 32], strides = [1, 1]} : vector<2x128xf32> to vector<2x32xf32>
    %cst_47 = arith.constant 5.000000e-01 : f32
    %162 = vector.broadcast %cst_47 : f32 to vector<2x32xf32>
    %163 = arith.mulf %162, %161 : vector<2x32xf32>
    %cst_48 = arith.constant 5.000000e-01 : f32
    %164 = vector.broadcast %cst_48 : f32 to vector<2x32xf32>
    %165 = arith.addf %163, %164 : vector<2x32xf32>
    %166 = vector.extract_strided_slice %160 {offsets = [0, 32], sizes = [2, 32], strides = [1, 1]} : vector<2x128xf32> to vector<2x32xf32>
    %cst_49 = arith.constant 5.000000e-01 : f32
    %167 = vector.broadcast %cst_49 : f32 to vector<2x32xf32>
    %168 = arith.mulf %167, %166 : vector<2x32xf32>
    %cst_50 = arith.constant 5.000000e-01 : f32
    %169 = vector.broadcast %cst_50 : f32 to vector<2x32xf32>
    %170 = arith.addf %168, %169 : vector<2x32xf32>
    %171 = vector.extract_strided_slice %160 {offsets = [0, 64], sizes = [2, 32], strides = [1, 1]} : vector<2x128xf32> to vector<2x32xf32>
    %172 = vector.extract_strided_slice %160 {offsets = [0, 96], sizes = [2, 32], strides = [1, 1]} : vector<2x128xf32> to vector<2x32xf32>
    %cst_51 = arith.constant 5.000000e-01 : f32
    %173 = vector.broadcast %cst_51 : f32 to vector<2x32xf32>
    %174 = arith.mulf %173, %172 : vector<2x32xf32>
    %cst_52 = arith.constant 5.000000e-01 : f32
    %175 = vector.broadcast %cst_52 : f32 to vector<2x32xf32>
    %176 = arith.addf %174, %175 : vector<2x32xf32>
    %177 = arith.mulf %170, %153 : vector<2x32xf32>
    %178 = arith.mulf %165, %171 : vector<2x32xf32>
    %179 = arith.addf %177, %178 : vector<2x32xf32>
    %180 = math.tanh %179 : vector<2x32xf32>
    %181 = arith.mulf %176, %180 : vector<2x32xf32>
    %182 = vector.extract_strided_slice %9 {offsets = [14, 0], sizes = [2, 128], strides = [1, 1]} : vector<16x128xf32> to vector<2x128xf32>
    %183 = arith.truncf %181 : vector<2x32xf32> to vector<2x32xbf16>
    %cst_53 = arith.constant dense<0.000000e+00> : vector<2x128xf32>
    %184 = tpu.matmul %183, %2, %cst_53 {dimension_numbers = #tpu.dot_dimension_numbers<[1], [0], [0], [1], [0, 0, 1, 1], [], []>} : vector<2x32xbf16>, vector<32x128xbf16>, vector<2x128xf32> -> vector<2x128xf32>
    %185 = arith.addf %182, %184 : vector<2x128xf32>
    %186 = math.tanh %185 : vector<2x128xf32>
    %187 = vector.extract_strided_slice %186 {offsets = [0, 0], sizes = [2, 32], strides = [1, 1]} : vector<2x128xf32> to vector<2x32xf32>
    %cst_54 = arith.constant 5.000000e-01 : f32
    %188 = vector.broadcast %cst_54 : f32 to vector<2x32xf32>
    %189 = arith.mulf %188, %187 : vector<2x32xf32>
    %cst_55 = arith.constant 5.000000e-01 : f32
    %190 = vector.broadcast %cst_55 : f32 to vector<2x32xf32>
    %191 = arith.addf %189, %190 : vector<2x32xf32>
    %192 = vector.extract_strided_slice %186 {offsets = [0, 32], sizes = [2, 32], strides = [1, 1]} : vector<2x128xf32> to vector<2x32xf32>
    %cst_56 = arith.constant 5.000000e-01 : f32
    %193 = vector.broadcast %cst_56 : f32 to vector<2x32xf32>
    %194 = arith.mulf %193, %192 : vector<2x32xf32>
    %cst_57 = arith.constant 5.000000e-01 : f32
    %195 = vector.broadcast %cst_57 : f32 to vector<2x32xf32>
    %196 = arith.addf %194, %195 : vector<2x32xf32>
    %197 = vector.extract_strided_slice %186 {offsets = [0, 64], sizes = [2, 32], strides = [1, 1]} : vector<2x128xf32> to vector<2x32xf32>
    %198 = vector.extract_strided_slice %186 {offsets = [0, 96], sizes = [2, 32], strides = [1, 1]} : vector<2x128xf32> to vector<2x32xf32>
    %cst_58 = arith.constant 5.000000e-01 : f32
    %199 = vector.broadcast %cst_58 : f32 to vector<2x32xf32>
    %200 = arith.mulf %199, %198 : vector<2x32xf32>
    %cst_59 = arith.constant 5.000000e-01 : f32
    %201 = vector.broadcast %cst_59 : f32 to vector<2x32xf32>
    %202 = arith.addf %200, %201 : vector<2x32xf32>
    %203 = arith.mulf %196, %179 : vector<2x32xf32>
    %204 = arith.mulf %191, %197 : vector<2x32xf32>
    %205 = arith.addf %203, %204 : vector<2x32xf32>
    %206 = math.tanh %205 : vector<2x32xf32>
    %207 = arith.mulf %202, %206 : vector<2x32xf32>
    %cst_60 = arith.constant dense<0.000000e+00> : vector<2x128xf32>
    %208 = tpu.matmul %207, %4, %cst_60 {dimension_numbers = #tpu.dot_dimension_numbers<[1], [0], [0], [1], [0, 0, 1, 1], [], []>} : vector<2x32xf32>, vector<32x128xf32>, vector<2x128xf32> -> vector<2x128xf32>
    %209 = vector.broadcast %5 : vector<1x128xf32> to vector<2x128xf32>
    %210 = arith.addf %208, %209 : vector<2x128xf32>
    %211 = vector.extract_strided_slice %210 {offsets = [0, 0], sizes = [2, 8], strides = [1, 1]} : vector<2x128xf32> to vector<2x8xf32>
    %c0_61 = arith.constant 0 : index
    %c0_62 = arith.constant 0 : index
    %212 = vector.load %arg2[%c0_61, %c0_62] : memref<2x8xf32, #tpu.memory_space<vmem>>, vector<2x8xf32>
    tpu.vector_store %arg2[%c0_61, %c0_62], %211 {strides = array<i32>} : memref<2x8xf32, #tpu.memory_space<vmem>>, vector<2x8xf32>,
    return
  }
}

</mosaic_0001>

<llo_original>
// kernel: lstm_forward.1
$region0: #{lstm_forward.1}
  #allocation0 [shape = 'u32[]', space=smem, size = 0x4, offset = 0x4, fixed_abs, tag = 'smem constant byte address 0x4 - core index']
  #allocation1 [shape = 'u32[72,128]{1,0:T(1,128)}', space=vmem, size = 0x9000, scoped, tag = 'internal scratch']
  %s0 = inlined_call_operand.vmem [shape: f32[16,8], index: 0, kind: input, shape index: {}]
  %s1 = inlined_call_operand.hbm [shape: f32[88,128], index: 1, kind: input, shape index: {}]
  %s2 = inlined_call_operand.hbm [shape: f32[2,8], index: 2, kind: output, shape index: {}]
  %s3 = sld [smem:[#allocation0]]
  $region22: #{lstm_forward.1} parent=0
    _
  %s5 = ssub.s32 1, %s3
  %s6 = scalar_select 0, %s5, %s3
  $region1: #{lstm_forward.1} parent=0
    #allocation2 [shape = 'u8[45056]{0}', space=vmem, size = 0xb000, scoped, tag = 'input window, operand 1, single buffered']
    #allocation3 [shape = 's32[1]{0}', space=sflag, size = 0x4, scoped, tag = 'scoped memory for lstm_forward.1']
    #allocation4 [shape = 's32[1]{0}', space=sflag, size = 0x4, scoped, tag = 'scoped memory for lstm_forward.1']
    #allocation5 [shape = 'u8[1024]{0}', space=vmem, size = 0x400, scoped, tag = 'output window, operand 0, single buffered']
    %7 = vsyncpa [#allocation3], 0
    %8 = vsyncpa [#allocation4], 0
    // Predicated region
    $region2: #{lstm_forward.1} parent=1 // pred_check
      _
    $region3: #{lstm_forward.1} parent=1 // pred_check_branch
      %10 = sbr.rel (0) target = $region5
    $region4: #{lstm_forward.1} parent=1 // pred_region
      _
    $region5: #{lstm_forward.1} parent=1 // pred_fallthru
      _
    // Predicated region
    $region6: #{lstm_forward.1} parent=1 // pred_check
      _
    $region7: #{lstm_forward.1} parent=1 // pred_check_branch
      %12 = sbr.rel (0) target = $region9
    $region8: #{lstm_forward.1} parent=1 // pred_region
      %14 = vsyncadd [#allocation3], 0
      %s15 = sshll.u32 %s1, 4
      %s16 = int_to_ptr.hbm [resolvable:$true] %s15
      %s17 = sshll.u32 [#allocation2], 4
      %s18 = int_to_ptr.vmem [resolvable:$true] %s17
      %23 = dma.hbm_to_vmem [thread:$0]  %s16, 1408, %s18, [#allocation3], 128, 128, 8
    $region9: #{lstm_forward.1} parent=1 // pred_fallthru
      _
    // Predicated region
    $region10: #{lstm_forward.1} parent=1 // pred_check
      _
    $region11: #{lstm_forward.1} parent=1 // pred_check_branch
      %25 = sbr.rel (0) target = $region13
    $region12: #{lstm_forward.1} parent=1 // pred_region
      %27 = dma.done [#allocation3], 1408
    $region13: #{lstm_forward.1} parent=1 // pred_fallthru
      _
    %v29 = vld [vmem:[#allocation2] sm:$0xff]
    %v30 = vld [vmem:[#allocation2 + $0x8] sm:$0xff]
    %v31 = vld [vmem:[#allocation2 + $0x10] sm:$0xff]
    %v32 = vld [vmem:[#allocation2 + $0x18] sm:$0xff]
    %v33 = vld [vmem:[#allocation2 + $0x20] sm:$0xff]
    %v34 = vpack.c.bf16 %v31, %v30
    %v35 = vpack.c.bf16 %v33, %v32
    %v36 = vld [vmem:[#allocation2 + $0x28] sm:$0x1]
    %v37 = vld [vmem:[#allocation2 + $0x30] sm:$0xff]
    %v38 = vld [vmem:[#allocation2 + $0x38] sm:$0xff]
    %v39 = vld [vmem:[#allocation2 + $0x40] sm:$0xff]
    %v40 = vld [vmem:[#allocation2 + $0x48] sm:$0xff]
    %v41 = vld [vmem:[#allocation2 + $0x50] sm:$0x1]
    %v42 = vld [vmem:[%s0] sm:$0xff]
    %v43 = vld [vmem:[%s0 + $0x8] sm:$0xff]
    %v44 = vperm.slane %v36, 0
    %vm45 = vcmask 64512
    %v47 = vsel %vm45, %v42, 0
    %v50 = vsel %vm45, %v43, 0
    %52 = vmatpush.msra.mxu0 0.0
    %53 = vmatpush.msra.mxu0 0.0
    %54 = vmatpush.msra.mxu0 0.0
    %55 = vmatpush.msra.mxu0 0.0
    %56 = vmatpush.msra.mxu0 0.0
    %57 = vmatpush.msra.mxu0 0.0
    %58 = vmatpush.msra.mxu0 0.0
    %59 = vmatpush.msra.mxu0 0.0
    %60 = vmatpush.msra.mxu0 0.0
    %61 = vmatpush.msra.mxu0 0.0
    %62 = vmatpush.msra.mxu0 0.0
    %63 = vmatpush.msra.mxu0 0.0
    %64 = vmatpush.msra.mxu0 0.0
    %65 = vmatpush.msra.mxu0 0.0
    %66 = vmatpush.msra.mxu0 0.0
    %67 = vmatpush.msra.mxu0 %v29
    %68 = vmatmul.f32.gmra.mxu0 %v47
    %v69 = vpop.f32.mrf.mxu0
    %v70 = vadd.f32 %v44, %v69
    %71 = vmatmul.f32.gmra.mxu0 %v50
    %v72 = vpop.f32.mrf.mxu0
    %v73 = vadd.f32 %v44, %v72
    %74 = vdwg.mxu0
    %v75 = vtanh.pop %v70
    %v76 = vmul.f32 %v75, 0.5
    %v77 = vadd.f32 %v76, 0.5
    %79 = vrot.lane.b32.xlu0 %v75, 64
    %v80 = vpop.permute.xlu0 %79
    %v82 = vmul.f32 %v77, %v80
    %v83 = vtanh.pop %v82
    %85 = vrot.lane.b32.xlu0 %v83, 96
    %v86 = vpop.permute.xlu0 %85
    %v88 = vmul.f32 %v77, %v86
    %v89 = vpack.c.bf16 %v88, %v88
    %91 = vrot.lane.b32.xlu0 %v89, 32
    %v92 = vpop.permute.xlu0 %91
    %vm93 = vcmask 261120
    %v95 = vsel %vm93, %v92, 0
    %97 = vmatpush.bf16.msra.mxu0 0
    %98 = vmatpush.bf16.msra.mxu0 0
    %99 = vmatpush.bf16.msra.mxu0 0
    %100 = vmatpush.bf16.msra.mxu0 0
    %101 = vmatpush.bf16.msra.mxu0 0
    %102 = vmatpush.bf16.msra.mxu0 0
    %103 = vmatpush.bf16.msra.mxu0 %v35
    %104 = vmatpush.bf16.msra.mxu0 %v34
    %105 = vmatmul.bf16.gmra.mxu0 %v95
    %v106 = vpop.f32.mrf.mxu0
    %v107 = vadd.f32 0.0, %v106
    %v108 = vpop.f32.mrf.mxu0
    %109 = vdwg.mxu0
    %v111 = vrot.slane %v107, 6
    %v113 = vadd.f32 %v70, %v111
    %v114 = vtanh.pop %v113
    %v115 = vmul.f32 %v114, 0.5
    %v116 = vadd.f32 %v115, 0.5
    %v118 = vrot.slane %v82, 6
    %119 = vrot.lane.b32.xlu0 %v118, 32
    %v120 = vpop.permute.xlu0 %119
    %v122 = vmul.f32 %v116, %v120
    %124 = vrot.lane.b32.xlu0 %v114, 64
    %v125 = vpop.permute.xlu0 %124
    %v127 = vmul.f32 %v116, %v125
    %129 = vrot.lane.b32.xlu0 %v127, 32
    %v130 = vpop.permute.xlu0 %129
    %v132 = vadd.f32 %v122, %v130
    %v133 = vtanh.pop %v132
    %135 = vrot.lane.b32.xlu0 %v133, 64
    %v136 = vpop.permute.xlu0 %135
    %v138 = vmul.f32 %v116, %v136
    %v139 = vpack.c.bf16 %v138, %v138
    %v141 = vrot.slane %v139, 1
    %142 = vrot.lane.b32.xlu0 %v141, 32
    %v143 = vpop.permute.xlu0 %142
    %v145 = vsel %vm93, %v143, 0
    %147 = vmatpush.bf16.msra.mxu0 0
    %148 = vmatpush.bf16.msra.mxu0 0
    %149 = vmatpush.bf16.msra.mxu0 0
    %150 = vmatpush.bf16.msra.mxu0 0
    %151 = vmatpush.bf16.msra.mxu0 0
    %152 = vmatpush.bf16.msra.mxu0 0
    %153 = vmatpush.bf16.msra.mxu0 %v35
    %154 = vmatpush.bf16.msra.mxu0 %v34
    %155 = vmatmul.bf16.gmra.mxu0 %v145
    %v156 = vpop.f32.mrf.mxu0
    %v157 = vadd.f32 0.0, %v156
    %v158 = vpop.f32.mrf.mxu0
    %159 = vdwg.mxu0
    %v161 = vrot.slane %v157, 4
    %v163 = vadd.f32 %v70, %v161
    %v164 = vtanh.pop %v163
    %v165 = vmul.f32 %v164, 0.5
    %v166 = vadd.f32 %v165, 0.5
    %v168 = vrot.slane %v132, 6
    %v170 = vmul.f32 %v166, %v168
    %172 = vrot.lane.b32.xlu0 %v164, 64
    %v173 = vpop.permute.xlu0 %172
    %v175 = vmul.f32 %v166, %v173
    %177 = vrot.lane.b32.xlu0 %v175, 32
    %v178 = vpop.permute.xlu0 %177
    %v180 = vadd.f32 %v170, %v178
    %v181 = vtanh.pop %v180
    %183 = vrot.lane.b32.xlu0 %v181, 64
    %v184 = vpop.permute.xlu0 %183
    %v186 = vmul.f32 %v166, %v184
    %v187 = vpack.c.bf16 %v186, %v186
    %v189 = vrot.slane %v187, 2
    %190 = vrot.lane.b32.xlu0 %v189, 32
    %v191 = vpop.permute.xlu0 %190
    %v193 = vsel %vm93, %v191, 0
    %195 = vmatpush.bf16.msra.mxu0 0
    %196 = vmatpush.bf16.msra.mxu0 0
    %197 = vmatpush.bf16.msra.mxu0 0
    %198 = vmatpush.bf16.msra.mxu0 0
    %199 = vmatpush.bf16.msra.mxu0 0
    %200 = vmatpush.bf16.msra.mxu0 0
    %201 = vmatpush.bf16.msra.mxu0 %v35
    %202 = vmatpush.bf16.msra.mxu0 %v34
    %203 = vmatmul.bf16.gmra.mxu0 %v193
    %v204 = vpop.f32.mrf.mxu0
    %v205 = vadd.f32 0.0, %v204
    %v206 = vpop.f32.mrf.mxu0
    %207 = vdwg.mxu0
    %v209 = vrot.slane %v205, 2
    %v211 = vadd.f32 %v70, %v209
    %v212 = vtanh.pop %v211
    %v213 = vmul.f32 %v212, 0.5
    %v214 = vadd.f32 %v213, 0.5
    %v216 = vrot.slane %v180, 6
    %v218 = vmul.f32 %v214, %v216
    %220 = vrot.lane.b32.xlu0 %v212, 64
    %v221 = vpop.permute.xlu0 %220
    %v223 = vmul.f32 %v214, %v221
    %225 = vrot.lane.b32.xlu0 %v223, 32
    %v226 = vpop.permute.xlu0 %225
    %v228 = vadd.f32 %v218, %v226
    %v229 = vtanh.pop %v228
    %231 = vrot.lane.b32.xlu0 %v229, 64
    %v232 = vpop.permute.xlu0 %231
    %v234 = vmul.f32 %v214, %v232
    %v235 = vpack.c.bf16 %v234, %v234
    %v237 = vrot.slane %v235, 3
    %238 = vrot.lane.b32.xlu0 %v237, 32
    %v239 = vpop.permute.xlu0 %238
    %v241 = vsel %vm93, %v239, 0
    %243 = vmatpush.bf16.msra.mxu0 0
    %244 = vmatpush.bf16.msra.mxu0 0
    %245 = vmatpush.bf16.msra.mxu0 0
    %246 = vmatpush.bf16.msra.mxu0 0
    %247 = vmatpush.bf16.msra.mxu0 0
    %248 = vmatpush.bf16.msra.mxu0 0
    %249 = vmatpush.bf16.msra.mxu0 %v35
    %250 = vmatpush.bf16.msra.mxu0 %v34
    %251 = vmatmul.bf16.gmra.mxu0 %v241
    %v252 = vpop.f32.mrf.mxu0
    %v253 = vadd.f32 0.0, %v252
    %v254 = vpop.f32.mrf.mxu0
    %255 = vdwg.mxu0
    %v256 = vadd.f32 %v73, %v253
    %v257 = vtanh.pop %v256
    %v258 = vmul.f32 %v257, 0.5
    %v259 = vadd.f32 %v258, 0.5
    %v261 = vrot.slane %v228, 6
    %v263 = vmul.f32 %v259, %v261
    %265 = vrot.lane.b32.xlu0 %v257, 64
    %v266 = vpop.permute.xlu0 %265
    %v268 = vmul.f32 %v259, %v266
    %270 = vrot.lane.b32.xlu0 %v268, 32
    %v271 = vpop.permute.xlu0 %270
    %v273 = vadd.f32 %v263, %v271
    %v274 = vtanh.pop %v273
    %276 = vrot.lane.b32.xlu0 %v274, 64
    %v277 = vpop.permute.xlu0 %276
    %v279 = vmul.f32 %v259, %v277
    %v280 = vpack.c.bf16 %v279, %v279
    %282 = vrot.lane.b32.xlu0 %v280, 32
    %v283 = vpop.permute.xlu0 %282
    %v285 = vsel %vm93, %v283, 0
    %287 = vmatpush.bf16.msra.mxu0 0
    %288 = vmatpush.bf16.msra.mxu0 0
    %289 = vmatpush.bf16.msra.mxu0 0
    %290 = vmatpush.bf16.msra.mxu0 0
    %291 = vmatpush.bf16.msra.mxu0 0
    %292 = vmatpush.bf16.msra.mxu0 0
    %293 = vmatpush.bf16.msra.mxu0 %v35
    %294 = vmatpush.bf16.msra.mxu0 %v34
    %295 = vmatmul.bf16.gmra.mxu0 %v285
    %v296 = vpop.f32.mrf.mxu0
    %v297 = vadd.f32 0.0, %v296
    %v298 = vpop.f32.mrf.mxu0
    %299 = vdwg.mxu0
    %v301 = vrot.slane %v297, 6
    %v303 = vadd.f32 %v73, %v301
    %v304 = vtanh.pop %v303
    %v305 = vmul.f32 %v304, 0.5
    %v306 = vadd.f32 %v305, 0.5
    %v308 = vrot.slane %v273, 6
    %v310 = vmul.f32 %v306, %v308
    %312 = vrot.lane.b32.xlu0 %v304, 64
    %v313 = vpop.permute.xlu0 %312
    %v315 = vmul.f32 %v306, %v313
    %317 = vrot.lane.b32.xlu0 %v315, 32
    %v318 = vpop.permute.xlu0 %317
    %v320 = vadd.f32 %v310, %v318
    %v321 = vtanh.pop %v320
    %323 = vrot.lane.b32.xlu0 %v321, 64
    %v324 = vpop.permute.xlu0 %323
    %v326 = vmul.f32 %v306, %v324
    %v327 = vpack.c.bf16 %v326, %v326
    %v329 = vrot.slane %v327, 1
    %330 = vrot.lane.b32.xlu0 %v329, 32
    %v331 = vpop.permute.xlu0 %330
    %v333 = vsel %vm93, %v331, 0
    %335 = vmatpush.bf16.msra.mxu0 0
    %336 = vmatpush.bf16.msra.mxu0 0
    %337 = vmatpush.bf16.msra.mxu0 0
    %338 = vmatpush.bf16.msra.mxu0 0
    %339 = vmatpush.bf16.msra.mxu0 0
    %340 = vmatpush.bf16.msra.mxu0 0
    %341 = vmatpush.bf16.msra.mxu0 %v35
    %342 = vmatpush.bf16.msra.mxu0 %v34
    %343 = vmatmul.bf16.gmra.mxu0 %v333
    %v344 = vpop.f32.mrf.mxu0
    %v345 = vadd.f32 0.0, %v344
    %v346 = vpop.f32.mrf.mxu0
    %347 = vdwg.mxu0
    %v349 = vrot.slane %v345, 4
    %v351 = vadd.f32 %v73, %v349
    %v352 = vtanh.pop %v351
    %v353 = vmul.f32 %v352, 0.5
    %v354 = vadd.f32 %v353, 0.5
    %v356 = vrot.slane %v320, 6
    %v358 = vmul.f32 %v354, %v356
    %360 = vrot.lane.b32.xlu0 %v352, 64
    %v361 = vpop.permute.xlu0 %360
    %v363 = vmul.f32 %v354, %v361
    %365 = vrot.lane.b32.xlu0 %v363, 32
    %v366 = vpop.permute.xlu0 %365
    %v368 = vadd.f32 %v358, %v366
    %v369 = vtanh.pop %v368
    %371 = vrot.lane.b32.xlu0 %v369, 64
    %v372 = vpop.permute.xlu0 %371
    %v374 = vmul.f32 %v354, %v372
    %v375 = vpack.c.bf16 %v374, %v374
    %v377 = vrot.slane %v375, 2
    %378 = vrot.lane.b32.xlu0 %v377, 32
    %v379 = vpop.permute.xlu0 %378
    %v381 = vsel %vm93, %v379, 0
    %383 = vmatpush.bf16.msra.mxu0 0
    %384 = vmatpush.bf16.msra.mxu0 0
    %385 = vmatpush.bf16.msra.mxu0 0
    %386 = vmatpush.bf16.msra.mxu0 0
    %387 = vmatpush.bf16.msra.mxu0 0
    %388 = vmatpush.bf16.msra.mxu0 0
    %389 = vmatpush.bf16.msra.mxu0 %v35
    %390 = vmatpush.bf16.msra.mxu0 %v34
    %391 = vmatmul.bf16.gmra.mxu0 %v381
    %v392 = vpop.f32.mrf.mxu0
    %v393 = vadd.f32 0.0, %v392
    %v394 = vpop.f32.mrf.mxu0
    %395 = vdwg.mxu0
    %v397 = vrot.slane %v393, 2
    %v399 = vadd.f32 %v73, %v397
    %v400 = vtanh.pop %v399
    %v401 = vmul.f32 %v400, 0.5
    %v402 = vadd.f32 %v401, 0.5
    %v404 = vrot.slane %v368, 6
    %v406 = vmul.f32 %v402, %v404
    %408 = vrot.lane.b32.xlu0 %v400, 64
    %v409 = vpop.permute.xlu0 %408
    %v411 = vmul.f32 %v402, %v409
    %413 = vrot.lane.b32.xlu0 %v411, 32
    %v414 = vpop.permute.xlu0 %413
    %v416 = vadd.f32 %v406, %v414
    %v417 = vtanh.pop %v416
    %419 = vrot.lane.b32.xlu0 %v417, 64
    %v420 = vpop.permute.xlu0 %419
    %v422 = vmul.f32 %v402, %v420
    %v423 = vperm.slane %v41, 0
    %v425 = vrot.slane %v422, 6
    %426 = vrot.lane.b32.xlu0 %v425, 32
    %v427 = vpop.permute.xlu0 %426
    %v428 = vsel %vm93, %v427, 0
    %430 = vmatpush.msra.mxu0 0.0
    %431 = vmatpush.msra.mxu0 0.0
    %432 = vmatpush.msra.mxu0 0.0
    %433 = vmatpush.msra.mxu0 0.0
    %434 = vmatpush.msra.mxu0 0.0
    %435 = vmatpush.msra.mxu0 0.0
    %436 = vmatpush.msra.mxu0 0.0
    %437 = vmatpush.msra.mxu0 0.0
    %438 = vmatpush.msra.mxu0 0.0
    %439 = vmatpush.msra.mxu0 0.0
    %440 = vmatpush.msra.mxu0 0.0
    %441 = vmatpush.msra.mxu0 0.0
    %442 = vmatpush.msra.mxu0 %v40
    %443 = vmatpush.msra.mxu0 %v39
    %444 = vmatpush.msra.mxu0 %v38
    %445 = vmatpush.msra.mxu0 %v37
    %446 = vmatmul.f32.gmra.mxu0 %v428
    %v447 = vpop.f32.mrf.mxu0
    %v448 = vadd.f32 %v423, %v447
    %449 = vdwg.mxu0
    %vm450 = vcmask 58368
    %451 = vst.msk [vmem:[#allocation5] sm:$0x3] %vm450, %v448
    // Predicated region
    $region14: #{lstm_forward.1} parent=1 // pred_check
      _
    $region15: #{lstm_forward.1} parent=1 // pred_check_branch
      %453 = sbr.rel (0) target = $region17
    $region16: #{lstm_forward.1} parent=1 // pred_region
      %455 = vsyncadd [#allocation4], 0
      %s457 = sshll.u32 [#allocation5], 4
      %s458 = int_to_ptr.vmem [resolvable:$true] %s457
      %s459 = sshll.u32 %s2, 4
      %s460 = int_to_ptr.hbm [resolvable:$true] %s459
      %462 = dma.vmem_to_hbm [thread:$0]  %s458, 32, %s460, [#allocation4]
    $region17: #{lstm_forward.1} parent=1 // pred_fallthru
      _
    // Predicated region
    $region18: #{lstm_forward.1} parent=1 // pred_check
      _
    $region19: #{lstm_forward.1} parent=1 // pred_check_branch
      %464 = sbr.rel (0) target = $region21
    $region20: #{lstm_forward.1} parent=1 // pred_region
      %466 = dma.done [#allocation4], 32
    $region21: #{lstm_forward.1} parent=1 // pred_fallthru
      _
    %467 = vsyncpa [#allocation3], 1
    %468 = vsyncpa [#allocation4], 1

</llo_original>
